<compile_context>
chip_gen: v5e
topology: v5e:2x2
jax: 0.10.0
libtpu: 0.0.40
codegen_flags: <defaults>
</compile_context>

<pallas_src>
import functools

import jax
import jax.numpy as jnp
import numpy as np
from jax.experimental import pallas as pl
from jax.experimental.pallas import tpu as pltpu

_MAX_BATCH_TILE = 8   # bound on the static unroll of the per-image matmul loop


def _concat_block3_kernel(x1_ref, x2_ref, x3_ref, w_ref, shift_ref, out_ref,
                          *, nb, inv_hw, mxu_dtype, combine_dtype, approx_recip):
    f32 = jnp.float32

    # --- AdaptiveAvgPool2d((1,1)): per-(n,c) mean over the spatial lanes.
    # f32 accumulation fused into the reduce; no f32 copies of the slabs.
    # The block's last dim is the full HW, so there are no garbage lanes.
    m1 = jnp.sum(x1_ref[...], axis=-1, keepdims=True, dtype=f32) * inv_hw  # (nb,C,1)
    m2 = jnp.sum(x2_ref[...], axis=-1, keepdims=True, dtype=f32) * inv_hw
    m3 = jnp.sum(x3_ref[...], axis=-1, keepdims=True, dtype=f32) * inv_hw

    # --- sigmoid then softmax over the 3 branches.  Sigmoid outputs lie in
    # (0,1), so the usual max-subtraction is unnecessary.
    e1 = jnp.exp(jax.nn.sigmoid(m1))
    e2 = jnp.exp(jax.nn.sigmoid(m2))
    e3 = jnp.exp(jax.nn.sigmoid(m3))
    inv_den = pl.reciprocal(e1 + e2 + e3, approx=approx_recip)
    w1 = (e1 * inv_den).astype(combine_dtype)
    w2 = (e2 * inv_den).astype(combine_dtype)
    w3 = (e3 * inv_den).astype(combine_dtype)

    # --- weighted combination: re-read the refs so the compiler promotes
    # per-vreg (no whole-slab temporaries).  (nb,C,1) lane-broadcast over
    # (nb,C,HW).  On v6e/v7x with bf16 IO this whole expression stays bf16.
    x_att = (w1 * x1_ref[...]
             + w2 * x2_ref[...]
             + w3 * x3_ref[...]).astype(mxu_dtype)                       # (nb,C,HW)

    w_mat = w_ref[...]        # (Cout, Cin), eval-BN scale already folded in
    shift = shift_ref[...]    # (Cout, 1) f32

    # --- 1x1 conv (no bias) == per-image (Cout,Cin)@(Cin,HW) MXU matmul with
    # f32 accumulation, then folded-BN shift + ReLU.  nb is small (<= 8) so
    # the static unroll is cheap, and the op is HBM-bound so MXU underfill
    # at tiny C is irrelevant.
    # TODO(synk): for very small C a VPU broadcast-FMA chain would avoid the
    # MXU entirely; not worth the complexity while HBM bandwidth is binding.
    for b in range(nb):
        y = jnp.dot(w_mat, x_att[b], preferred_element_type=jnp.float32)
        out_ref[b] = jnp.maximum(y + shift, 0.0).astype(out_ref.dtype)


def concat_block3(x1, x2, x3, conv_w, bn_gamma, bn_beta, bn_mean, bn_var,
                  eps=1e-5):
    """x1, x2, x3: (N, C, H, W). conv_w: (C, C). BN params: (C,).

    IO dtype follows the input dtype (no wrapper-side cast / pad / slice
    copies).  Hand in bf16 activations on v6e/v7x for ~2x less HBM traffic;
    pooling / softmax / matmul accumulation stay f32 either way.
    """
    N, C, H, W = x1.shape
    HW = H * W

    io_dtype = x1.dtype
    mxu_dtype = jnp.bfloat16 if io_dtype == jnp.bfloat16 else jnp.float32

    # v5e has no bf16 VPU/EUP: do the weighted combine in f32 there.  On
    # v6e/v7x with bf16 inputs the combine stays bf16 (native bf16 VALU).
    device_kind = jax.devices()[0].device_kind.lower()
    is_v5 = "v5" in device_kind
    combine_dtype = (jnp.bfloat16
                     if (io_dtype == jnp.bfloat16 and not is_v5)
                     else jnp.float32)

    # --- fold eval-mode BN: scale into the conv weight rows, shift kept apart.
    # TODO(synk): BatchNorm2d is implemented in inference mode only (training
    # mode batch statistics / running-stat updates have no single-pass
    # equivalent here).
    f32 = jnp.float32
    scale = bn_gamma.astype(f32) / jnp.sqrt(bn_var.astype(f32) + eps)
    w_folded = (conv_w.astype(f32) * scale[:, None]).astype(mxu_dtype)
    shift = (bn_beta.astype(f32) - bn_mean.astype(f32) * scale).reshape(C, 1)

    # --- flatten spatial dims (free reshape, no pad / cast copies).
    x1f = x1.reshape(N, C, HW)
    x2f = x2.reshape(N, C, HW)
    x3f = x3.reshape(N, C, HW)

    # --- VMEM budgeting: double-buffered 3-in + 1-out slabs PLUS in-kernel
    # temporaries (x_att in mxu dtype, the f32 matmul result, and one
    # combine-dtype slab of headroom for per-vreg promotes / spills).
    try:
        vmem_cap = int(pltpu.get_tpu_info().vmem_capacity_bytes)
    except Exception:
        vmem_cap = 64 * 1024 * 1024          # conservative (v7x per-core VMEM)
    vmem_limit = int(min(vmem_cap * 3 // 4, 96 * 1024 * 1024))

    io_b = jnp.dtype(io_dtype).itemsize
    mxu_b = jnp.dtype(mxu_dtype).itemsize
    comb_b = jnp.dtype(combine_dtype).itemsize
    per_n_bytes = (4 * 2 * io_b + mxu_b + 4 + comb_b) * C * HW
    fixed_bytes = C * C * mxu_b + C * 128 * 4 + (1 << 20)   # weight + shift + slack

    nb = max(1, (vmem_limit * 3 // 4 - fixed_bytes) // per_n_bytes)
    # Guarantee >= min(N, 4) grid steps (v7x megacore + pipeline overlap),
    # and cap the static matmul unroll.
    nb = int(min(nb, _MAX_BATCH_TILE, max(1, pl.cdiv(N, 4))))
    # Largest divisor of N <= nb: the grid tiles N exactly (no batch padding,
    # no wasted HBM writes, no output slice).
    while N % nb:
        nb -= 1

    x_spec = pl.BlockSpec((nb, C, HW), lambda n: (n, 0, 0))
    kernel = functools.partial(
        _concat_block3_kernel,
        nb=nb,
        inv_hw=float(1.0 / HW),
        mxu_dtype=mxu_dtype,
        combine_dtype=combine_dtype,
        approx_recip=bool(io_dtype == jnp.bfloat16),
    )

    # TODO(synk): if DMA latency is still exposed on v5e/v6e (tiny C*HW
    # blocks), add pipeline_mode=pl.Buffered(3) to the three x specs; skip on
    # v7x (64 MiB VMEM).
    out = pl.pallas_call(
        kernel,
        out_shape=jax.ShapeDtypeStruct((N, C, HW), io_dtype),
        grid=(N // nb,),
        in_specs=[
            x_spec, x_spec, x_spec,
            pl.BlockSpec((C, C), lambda n: (0, 0)),   # conv weight (BN scale folded)
            pl.BlockSpec((C, 1), lambda n: (0, 0)),   # BN shift
        ],
        out_specs=x_spec,
        compiler_params=pltpu.CompilerParams(
            dimension_semantics=("parallel",),
            vmem_limit_bytes=vmem_limit,
        ),
    )(x1f, x2f, x3f, w_folded, shift)

    return out.reshape(N, C, H, W)


def _reference(x1, x2, x3, conv_w, bn_gamma, bn_beta, bn_mean, bn_var,
               eps=1e-5):
    """Pure-JAX reference mirroring the PyTorch forward (eval-mode BN)."""
    def gap(x):
        return jnp.mean(x, axis=(2, 3), keepdims=True)           # (N,C,1,1)
    xk = jnp.concatenate([gap(x1), gap(x2), gap(x3)], axis=2)     # (N,C,3,1)
    w = jax.nn.softmax(jax.nn.sigmoid(xk), axis=2)                # (N,C,3,1)
    w1 = w[:, :, 0:1, :]
    w2 = w[:, :, 1:2, :]
    w3 = w[:, :, 2:3, :]
    x_att = w1 * x1 + w2 * x2 + w3 * x3                           # (N,C,H,W)
    y = jnp.einsum('oc,nchw->nohw', conv_w, x_att)                # 1x1 conv
    scale = bn_gamma / jnp.sqrt(bn_var + eps)
    shift = bn_beta - bn_mean * scale
    y = y * scale[None, :, None, None] + shift[None, :, None, None]
    return jnp.maximum(y, 0.0)


if __name__ == "__main__":
    key = jax.random.PRNGKey(0)
    N, C, H, W = 2, 4, 16, 16

    k1, k2, k3, kw = jax.random.split(key, 4)
    x1 = jax.random.normal(k1, (N, C, H, W), dtype=jnp.float32)
    x2 = jax.random.normal(k2, (N, C, H, W), dtype=jnp.float32)
    x3 = jax.random.normal(k3, (N, C, H, W), dtype=jnp.float32)

    # Conv2d(C, C, 1, bias=False): weight (C, C, 1, 1) -> (C, C), kaiming-ish scale.
    conv_w = jax.random.normal(kw, (C, C), dtype=jnp.float32) * (1.0 / np.sqrt(C))

    # Eval-mode BN with default-initialized parameters / running stats.
    bn_gamma = jnp.ones((C,), jnp.float32)
    bn_beta = jnp.zeros((C,), jnp.float32)
    bn_mean = jnp.zeros((C,), jnp.float32)
    bn_var = jnp.ones((C,), jnp.float32)

    ref = _reference(x1, x2, x3, conv_w, bn_gamma, bn_beta, bn_mean, bn_var)

    # Full-precision path (f32 IO, f32 MXU accumulation): tight tolerance.
    out_f32 = concat_block3(x1, x2, x3, conv_w, bn_gamma, bn_beta, bn_mean,
                            bn_var)
    out_f32 = jax.block_until_ready(out_f32)
    np.testing.assert_allclose(np.asarray(out_f32), np.asarray(ref),
                               rtol=1e-5, atol=1e-5)

    # Low-precision path: caller hands in bf16 activations (no wrapper cast);
    # bf16 IO + bf16 MXU operands, f32 pooling / softmax / accumulation.
    out_bf16 = concat_block3(x1.astype(jnp.bfloat16), x2.astype(jnp.bfloat16),
                             x3.astype(jnp.bfloat16), conv_w, bn_gamma,
                             bn_beta, bn_mean, bn_var)
    out_bf16 = jax.block_until_ready(out_bf16)
    np.testing.assert_allclose(np.asarray(out_bf16, dtype=np.float32),
                               np.asarray(ref), rtol=5e-2, atol=5e-2)

    print("KERNEL_OK")
</pallas_src>

<mosaic_0001>
module attributes {stable_mosaic.version = 11 : i64} {
  func.func @_concat_block3_kernel(%arg0: i32, %arg1: memref<1x4x256xf32, #tpu.memory_space<vmem>>, %arg2: memref<1x4x256xf32, #tpu.memory_space<vmem>>, %arg3: memref<1x4x256xf32, #tpu.memory_space<vmem>>, %arg4: memref<4x4xf32, #tpu.memory_space<vmem>>, %arg5: memref<4x1xf32, #tpu.memory_space<vmem>>, %arg6: memref<1x4x256xf32, #tpu.memory_space<vmem>>) attributes {dimension_semantics = [#tpu.dimension_semantics<parallel>], iteration_bounds = array<i64: 2>, scalar_prefetch = 0 : i64, scratch_operands = 0 : i64, tpu.core_type = #tpu.core_type<tc>, window_params = [{transform_indices = @transform_0, window_bounds = array<i64: 1, 4, 256>}, {transform_indices = @transform_1, window_bounds = array<i64: 1, 4, 256>}, {transform_indices = @transform_2, window_bounds = array<i64: 1, 4, 256>}, {pipeline_mode = #tpu.pipeline_mode<synchronous>, transform_indices = @transform_3, window_bounds = array<i64: 4, 4>}, {pipeline_mode = #tpu.pipeline_mode<synchronous>, transform_indices = @transform_4, window_bounds = array<i64: 4, 1>}, {transform_indices = @transform_5, window_bounds = array<i64: 1, 4, 256>}]} {
    %c0 = arith.constant 0 : index
    %c0_0 = arith.constant 0 : index
    %c0_1 = arith.constant 0 : index
    %0 = vector.load %arg1[%c0, %c0_0, %c0_1] : memref<1x4x256xf32, #tpu.memory_space<vmem>>, vector<1x4x256xf32>
    %cst = arith.constant dense<0.000000e+00> : vector<1x4xf32>
    %1 = vector.multi_reduction <add>, %0, %cst [2] : vector<1x4x256xf32> to vector<1x4xf32>
    %2 = vector.shape_cast %1 : vector<1x4xf32> to vector<1x4x1xf32>
    %cst_2 = arith.constant 3.906250e-03 : f32
    %3 = vector.broadcast %cst_2 : f32 to vector<1x4x1xf32>
    %4 = arith.mulf %2, %3 : vector<1x4x1xf32>
    %c0_3 = arith.constant 0 : index
    %c0_4 = arith.constant 0 : index
    %c0_5 = arith.constant 0 : index
    %5 = vector.load %arg2[%c0_3, %c0_4, %c0_5] : memref<1x4x256xf32, #tpu.memory_space<vmem>>, vector<1x4x256xf32>
    %cst_6 = arith.constant dense<0.000000e+00> : vector<1x4xf32>
    %6 = vector.multi_reduction <add>, %5, %cst_6 [2] : vector<1x4x256xf32> to vector<1x4xf32>
    %7 = vector.shape_cast %6 : vector<1x4xf32> to vector<1x4x1xf32>
    %cst_7 = arith.constant 3.906250e-03 : f32
    %8 = vector.broadcast %cst_7 : f32 to vector<1x4x1xf32>
    %9 = arith.mulf %7, %8 : vector<1x4x1xf32>
    %c0_8 = arith.constant 0 : index
    %c0_9 = arith.constant 0 : index
    %c0_10 = arith.constant 0 : index
    %10 = vector.load %arg3[%c0_8, %c0_9, %c0_10] : memref<1x4x256xf32, #tpu.memory_space<vmem>>, vector<1x4x256xf32>
    %cst_11 = arith.constant dense<0.000000e+00> : vector<1x4xf32>
    %11 = vector.multi_reduction <add>, %10, %cst_11 [2] : vector<1x4x256xf32> to vector<1x4xf32>
    %12 = vector.shape_cast %11 : vector<1x4xf32> to vector<1x4x1xf32>
    %cst_12 = arith.constant 3.906250e-03 : f32
    %13 = vector.broadcast %cst_12 : f32 to vector<1x4x1xf32>
    %14 = arith.mulf %12, %13 : vector<1x4x1xf32>
    %15 = arith.negf %4 : vector<1x4x1xf32>
    %16 = math.exp %15 : vector<1x4x1xf32>
    %cst_13 = arith.constant 1.000000e+00 : f32
    %17 = vector.broadcast %cst_13 : f32 to vector<1x4x1xf32>
    %18 = arith.addf %17, %16 : vector<1x4x1xf32>
    %19 = arith.divf %17, %18 : vector<1x4x1xf32>
    %20 = math.exp %19 : vector<1x4x1xf32>
    %21 = arith.negf %9 : vector<1x4x1xf32>
    %22 = math.exp %21 : vector<1x4x1xf32>
    %cst_14 = arith.constant 1.000000e+00 : f32
    %23 = vector.broadcast %cst_14 : f32 to vector<1x4x1xf32>
    %24 = arith.addf %23, %22 : vector<1x4x1xf32>
    %25 = arith.divf %23, %24 : vector<1x4x1xf32>
    %26 = math.exp %25 : vector<1x4x1xf32>
    %27 = arith.negf %14 : vector<1x4x1xf32>
    %28 = math.exp %27 : vector<1x4x1xf32>
    %cst_15 = arith.constant 1.000000e+00 : f32
    %29 = vector.broadcast %cst_15 : f32 to vector<1x4x1xf32>
    %30 = arith.addf %29, %28 : vector<1x4x1xf32>
    %31 = arith.divf %29, %30 : vector<1x4x1xf32>
    %32 = math.exp %31 : vector<1x4x1xf32>
    %33 = arith.addf %20, %26 : vector<1x4x1xf32>
    %34 = arith.addf %33, %32 : vector<1x4x1xf32>
    %35 = tpu.reciprocal %34 : vector<1x4x1xf32> -> vector<1x4x1xf32>
    %36 = arith.mulf %20, %35 : vector<1x4x1xf32>
    %37 = arith.mulf %26, %35 : vector<1x4x1xf32>
    %38 = arith.mulf %32, %35 : vector<1x4x1xf32>
    %c0_16 = arith.constant 0 : index
    %c0_17 = arith.constant 0 : index
    %c0_18 = arith.constant 0 : index
    %39 = vector.load %arg1[%c0_16, %c0_17, %c0_18] : memref<1x4x256xf32, #tpu.memory_space<vmem>>, vector<1x4x256xf32>
    %40 = vector.broadcast %36 : vector<1x4x1xf32> to vector<1x4x256xf32>
    %41 = arith.mulf %40, %39 : vector<1x4x256xf32>
    %c0_19 = arith.constant 0 : index
    %c0_20 = arith.constant 0 : index
    %c0_21 = arith.constant 0 : index
    %42 = vector.load %arg2[%c0_19, %c0_20, %c0_21] : memref<1x4x256xf32, #tpu.memory_space<vmem>>, vector<1x4x256xf32>
    %43 = vector.broadcast %37 : vector<1x4x1xf32> to vector<1x4x256xf32>
    %44 = arith.mulf %43, %42 : vector<1x4x256xf32>
    %45 = arith.addf %41, %44 : vector<1x4x256xf32>
    %c0_22 = arith.constant 0 : index
    %c0_23 = arith.constant 0 : index
    %c0_24 = arith.constant 0 : index
    %46 = vector.load %arg3[%c0_22, %c0_23, %c0_24] : memref<1x4x256xf32, #tpu.memory_space<vmem>>, vector<1x4x256xf32>
    %47 = vector.broadcast %38 : vector<1x4x1xf32> to vector<1x4x256xf32>
    %48 = arith.mulf %47, %46 : vector<1x4x256xf32>
    %49 = arith.addf %45, %48 : vector<1x4x256xf32>
    %c0_25 = arith.constant 0 : index
    %c0_26 = arith.constant 0 : index
    %50 = vector.load %arg4[%c0_25, %c0_26] : memref<4x4xf32, #tpu.memory_space<vmem>>, vector<4x4xf32>
    %c0_27 = arith.constant 0 : index
    %c0_28 = arith.constant 0 : index
    %51 = vector.load %arg5[%c0_27, %c0_28] : memref<4x1xf32, #tpu.memory_space<vmem>>, vector<4x1xf32>
    %52 = vector.shape_cast %49 : vector<1x4x256xf32> to vector<4x256xf32>
    %cst_29 = arith.constant dense<0.000000e+00> : vector<4x256xf32>
    %53 = tpu.matmul %50, %52, %cst_29 {dimension_numbers = #tpu.dot_dimension_numbers<[1], [0], [0], [1], [0, 0, 1, 1], [], []>} : vector<4x4xf32>, vector<4x256xf32>, vector<4x256xf32> -> vector<4x256xf32>
    %54 = vector.broadcast %51 : vector<4x1xf32> to vector<4x256xf32>
    %55 = arith.addf %53, %54 : vector<4x256xf32>
    %cst_30 = arith.constant 0.000000e+00 : f32
    %56 = vector.broadcast %cst_30 : f32 to vector<4x256xf32>
    %57 = arith.maximumf %55, %56 : vector<4x256xf32>
    %c0_31 = arith.constant 0 : index
    %c0_32 = arith.constant 0 : index
    %c0_33 = arith.constant 0 : index
    %58 = vector.load %arg6[%c0_31, %c0_32, %c0_33] : memref<1x4x256xf32, #tpu.memory_space<vmem>>, vector<1x4x256xf32>
    %59 = vector.shape_cast %58 : vector<1x4x256xf32> to vector<4x256xf32>
    %60 = vector.shape_cast %57 : vector<4x256xf32> to vector<1x4x256xf32>
    tpu.vector_store %arg6[%c0_31, %c0_32, %c0_33], %60 {strides = array<i32>} : memref<1x4x256xf32, #tpu.memory_space<vmem>>, vector<1x4x256xf32>,
    return
  }
  func.func @transform_0(%arg0: i32) -> (i32, i32, i32) {
    %c0_i32 = arith.constant 0 : i32
    %c0_i32_0 = arith.constant 0 : i32
    %c0_i32_1 = arith.constant 0 : i32
    return %arg0, %c0_i32, %c0_i32_0 : i32, i32, i32
  }
  func.func @transform_1(%arg0: i32) -> (i32, i32, i32) {
    %c0_i32 = arith.constant 0 : i32
    %c0_i32_0 = arith.constant 0 : i32
    %c0_i32_1 = arith.constant 0 : i32
    return %arg0, %c0_i32, %c0_i32_0 : i32, i32, i32
  }
  func.func @transform_2(%arg0: i32) -> (i32, i32, i32) {
    %c0_i32 = arith.constant 0 : i32
    %c0_i32_0 = arith.constant 0 : i32
    %c0_i32_1 = arith.constant 0 : i32
    return %arg0, %c0_i32, %c0_i32_0 : i32, i32, i32
  }
  func.func @transform_3(%arg0: i32) -> (i32, i32) {
    %c0_i32 = arith.constant 0 : i32
    %c0_i32_0 = arith.constant 0 : i32
    %c0_i32_1 = arith.constant 0 : i32
    return %c0_i32, %c0_i32_0 : i32, i32
  }
  func.func @transform_4(%arg0: i32) -> (i32, i32) {
    %c0_i32 = arith.constant 0 : i32
    %c0_i32_0 = arith.constant 0 : i32
    %c0_i32_1 = arith.constant 0 : i32
    return %c0_i32, %c0_i32_0 : i32, i32
  }
  func.func @transform_5(%arg0: i32) -> (i32, i32, i32) {
    %c0_i32 = arith.constant 0 : i32
    %c0_i32_0 = arith.constant 0 : i32
    %c0_i32_1 = arith.constant 0 : i32
    return %arg0, %c0_i32, %c0_i32_0 : i32, i32, i32
  }
}

</mosaic_0001>

<llo_original>
// kernel: tpu_custom_call.1
$region0: #{tpu_custom_call.1}
  #allocation0 [shape = 'u32[]', space=smem, size = 0x4, offset = 0x4, fixed_abs, tag = 'smem constant byte address 0x4 - core index']
  #allocation1 [shape = 'u32[72,128]{1,0:T(1,128)}', space=vmem, size = 0x9000, scoped, tag = 'internal scratch']
  %s0 = inlined_call_operand.hbm [shape: f32[2,4,256], index: 0, kind: input, shape index: {}]
  %s1 = inlined_call_operand.hbm [shape: f32[2,4,256], index: 1, kind: input, shape index: {}]
  %s2 = inlined_call_operand.hbm [shape: f32[2,4,256], index: 2, kind: input, shape index: {}]
  %s3 = inlined_call_operand.vmem [shape: f32[4,4], index: 3, kind: input, shape index: {}]
  %s4 = inlined_call_operand.vmem [shape: f32[4,1], index: 4, kind: input, shape index: {}]
  %s5 = inlined_call_operand.hbm [shape: f32[2,4,256], index: 5, kind: output, shape index: {}]
  %s6 = sld [smem:[#allocation0]]
  $region65: #{tpu_custom_call.1} parent=0
    _
  %s8 = ssub.s32 1, %s6
  %s9 = scalar_select 0, %s8, %s6
  $region1: #{tpu_custom_call.1} parent=0
    #allocation2 [shape = 'u8[8192]{0}', space=vmem, size = 0x2000, scoped, tag = 'input window, operand 0']
    #allocation3 [shape = 's32[2]{0}', space=sflag, size = 0x8, scoped, tag = 'scoped memory for tpu_custom_call.1']
    #allocation4 [shape = 's32[2]{0}', space=sflag, size = 0x8, scoped, tag = 'scoped memory for tpu_custom_call.1']
    #allocation5 [shape = 'u8[8192]{0}', space=vmem, size = 0x2000, scoped, tag = 'input window, operand 1']
    #allocation6 [shape = 's32[2]{0}', space=sflag, size = 0x8, scoped, tag = 'scoped memory for tpu_custom_call.1']
    #allocation7 [shape = 'u8[8192]{0}', space=vmem, size = 0x2000, scoped, tag = 'input window, operand 2']
    #allocation8 [shape = 'u8[8192]{0}', space=vmem, size = 0x2000, scoped, tag = 'output window, operand 0']
    %10 = vsyncpa [#allocation3], 0
    %s11 = scalar_lea.sflag [#allocation3], 1
    %12 = vsyncpa %s11, 0
    %13 = vsyncpa [#allocation6], 0
    %s14 = scalar_lea.sflag [#allocation6], 1
    %15 = vsyncpa %s14, 0
    %16 = vsyncpa [#allocation4], 0
    %s17 = scalar_lea.sflag [#allocation4], 1
    %18 = vsyncpa %s17, 0
    loop: start=0, step=1, limit=4
    $region2: #{tpu_custom_call.1} parent=1 // loop_pre_header
      _
    $region3: #{tpu_custom_call.1} parent=1 // loop_header
      %s20 = sphi 0, %s24
      %p21 = scmp.ge.s32.totalorder %s20, 4
      %s30 = sphi 0, %s32
      %s33 = sphi 0, %s30
      %s34 = sphi 0, %s33
      %s50 = sphi 0, %s34
      %s56 = sphi 0, %s58
      %s59 = sphi 0, %s56
      %s60 = sphi 0, %s59
      %s76 = sphi 0, %s60
      %s82 = sphi 0, %s84
      %s85 = sphi 0, %s82
      %s86 = sphi 0, %s85
      %s102 = sphi 0, %s86
      %s106 = sphi 0, %s106
      %s108 = sphi 0, %s106
      %s109 = sphi 0, %s108
      %s123 = sphi 0, %s109
      %s127 = sphi 0, %s127
      %s129 = sphi 0, %s127
      %s130 = sphi 0, %s129
      %s144 = sphi 0, %s130
      %s150 = sphi 0, %s152
      %s153 = sphi 0, %s150
      %s154 = sphi 0, %s153
      %s170 = sphi 0, %s154
    $region4: #{tpu_custom_call.1} parent=1 // loop_header_branch
      %23 = sbr.rel (%p21) target = $region8
    $region5: #{tpu_custom_call.1} parent=1 // loop_body
      %s25 = ssub.s32 %s20, 1
      %s26 = ssub.s32 %s20, 2
      %s27 = sadd.s32 %s20, 1
      %s28 = ssub.s32 %s20, %s27
      %p29 = scmp.eq.s32.totalorder %s28, 0
      %s31 = sadd.s32 %s30, 1
      %s32 = scalar_select %p29, %s30, %s31
      %p35 = pneg %p29
      %p36 = scmp.eq.s32.totalorder %s20, 1
      %p37 = por %p35, %p36
      %p38 = scmp.ne.s32.totalorder %s30, %s33
      %p39 = scmp.eq.s32.totalorder %s20, 0
      %p40 = por %p38, %p39
      %p41 = scmp.ne.s32.totalorder %s30, %s33
      %p42 = scmp.eq.s32.totalorder %s25, 1
      %p43 = por %p41, %p42
      %p44 = scmp.ne.s32.totalorder %s33, %s34
      %p45 = scmp.eq.s32.totalorder %s25, 0
      %p46 = por %p44, %p45
      %p47 = scmp.ne.s32.totalorder %s33, %s34
      %p48 = scmp.eq.s32.totalorder %s26, 1
      %p49 = por %p47, %p48
      %p51 = scmp.ne.s32.totalorder %s34, %s50
      %p52 = scmp.eq.s32.totalorder %s26, 0
      %p53 = por %p51, %p52
      %s54 = ssub.s32 %s20, %s27
      %p55 = scmp.eq.s32.totalorder %s54, 0
      %s57 = sadd.s32 %s56, 1
      %s58 = scalar_select %p55, %s56, %s57
      %p61 = pneg %p55
      %p62 = scmp.eq.s32.totalorder %s20, 1
      %p63 = por %p61, %p62
      %p64 = scmp.ne.s32.totalorder %s56, %s59
      %p65 = scmp.eq.s32.totalorder %s20, 0
      %p66 = por %p64, %p65
      %p67 = scmp.ne.s32.totalorder %s56, %s59
      %p68 = scmp.eq.s32.totalorder %s25, 1
      %p69 = por %p67, %p68
      %p70 = scmp.ne.s32.totalorder %s59, %s60
      %p71 = scmp.eq.s32.totalorder %s25, 0
      %p72 = por %p70, %p71
      %p73 = scmp.ne.s32.totalorder %s59, %s60
      %p74 = scmp.eq.s32.totalorder %s26, 1
      %p75 = por %p73, %p74
      %p77 = scmp.ne.s32.totalorder %s60, %s76
      %p78 = scmp.eq.s32.totalorder %s26, 0
      %p79 = por %p77, %p78
      %s80 = ssub.s32 %s20, %s27
      %p81 = scmp.eq.s32.totalorder %s80, 0
      %s83 = sadd.s32 %s82, 1
      %s84 = scalar_select %p81, %s82, %s83
      %p87 = pneg %p81
      %p88 = scmp.eq.s32.totalorder %s20, 1
      %p89 = por %p87, %p88
      %p90 = scmp.ne.s32.totalorder %s82, %s85
      %p91 = scmp.eq.s32.totalorder %s20, 0
      %p92 = por %p90, %p91
      %p93 = scmp.ne.s32.totalorder %s82, %s85
      %p94 = scmp.eq.s32.totalorder %s25, 1
      %p95 = por %p93, %p94
      %p96 = scmp.ne.s32.totalorder %s85, %s86
      %p97 = scmp.eq.s32.totalorder %s25, 0
      %p98 = por %p96, %p97
      %p99 = scmp.ne.s32.totalorder %s85, %s86
      %p100 = scmp.eq.s32.totalorder %s26, 1
      %p101 = por %p99, %p100
      %p103 = scmp.ne.s32.totalorder %s86, %s102
      %p104 = scmp.eq.s32.totalorder %s26, 0
      %p105 = por %p103, %p104
      %s107 = sadd.s32 %s106, 1
      %p110 = scmp.eq.s32.totalorder %s20, 1
      %p111 = scmp.ne.s32.totalorder %s106, %s108
      %p112 = scmp.eq.s32.totalorder %s20, 0
      %p113 = por %p111, %p112
      %p114 = scmp.ne.s32.totalorder %s106, %s108
      %p115 = scmp.eq.s32.totalorder %s25, 1
      %p116 = por %p114, %p115
      %p117 = scmp.ne.s32.totalorder %s108, %s109
      %p118 = scmp.eq.s32.totalorder %s25, 0
      %p119 = por %p117, %p118
      %p120 = scmp.ne.s32.totalorder %s108, %s109
      %p121 = scmp.eq.s32.totalorder %s26, 1
      %p122 = por %p120, %p121
      %p124 = scmp.ne.s32.totalorder %s109, %s123
      %p125 = scmp.eq.s32.totalorder %s26, 0
      %p126 = por %p124, %p125
      %s128 = sadd.s32 %s127, 1
      %p131 = scmp.eq.s32.totalorder %s20, 1
      %p132 = scmp.ne.s32.totalorder %s127, %s129
      %p133 = scmp.eq.s32.totalorder %s20, 0
      %p134 = por %p132, %p133
      %p135 = scmp.ne.s32.totalorder %s127, %s129
      %p136 = scmp.eq.s32.totalorder %s25, 1
      %p137 = por %p135, %p136
      %p138 = scmp.ne.s32.totalorder %s129, %s130
      %p139 = scmp.eq.s32.totalorder %s25, 0
      %p140 = por %p138, %p139
      %p141 = scmp.ne.s32.totalorder %s129, %s130
      %p142 = scmp.eq.s32.totalorder %s26, 1
      %p143 = por %p141, %p142
      %p145 = scmp.ne.s32.totalorder %s130, %s144
      %p146 = scmp.eq.s32.totalorder %s26, 0
      %p147 = por %p145, %p146
      %s148 = ssub.s32 %s20, %s27
      %p149 = scmp.eq.s32.totalorder %s148, 0
      %s151 = sadd.s32 %s150, 1
      %s152 = scalar_select %p149, %s150, %s151
      %p155 = pneg %p149
      %p156 = scmp.eq.s32.totalorder %s20, 1
      %p157 = por %p155, %p156
      %p158 = scmp.ne.s32.totalorder %s150, %s153
      %p159 = scmp.eq.s32.totalorder %s20, 0
      %p160 = por %p158, %p159
      %p161 = scmp.ne.s32.totalorder %s150, %s153
      %p162 = scmp.eq.s32.totalorder %s25, 1
      %p163 = por %p161, %p162
      %p164 = scmp.ne.s32.totalorder %s153, %s154
      %p165 = scmp.eq.s32.totalorder %s25, 0
      %p166 = por %p164, %p165
      %p167 = scmp.ne.s32.totalorder %s153, %s154
      %p168 = scmp.eq.s32.totalorder %s26, 1
      %p169 = por %p167, %p168
      %p171 = scmp.ne.s32.totalorder %s154, %s170
      %p172 = scmp.eq.s32.totalorder %s26, 0
      %p173 = por %p171, %p172
      %p174 = scmp.le.s32.totalorder 1, %s20
      %p175 = scmp.lt.s32.totalorder %s20, 3
      %p176 = pnand %p174, %p175
      %p177 = pneg %p176
      // Predicated region
      $region9: #{tpu_custom_call.1} parent=5 // pred_check
        _
      $region10: #{tpu_custom_call.1} parent=5 // pred_check_branch
        %179 = sbr.rel (%p176) target = $region12
      $region11: #{tpu_custom_call.1} parent=5 // pred_region
        %s180 = ssub.s32 %s20, 1
        // Predicated region
        $region13: #{tpu_custom_call.1} parent=11 // pred_check
          %p181 = pneg %p119
        $region14: #{tpu_custom_call.1} parent=11 // pred_check_branch
          %183 = sbr.rel (%p181) target = $region16
        $region15: #{tpu_custom_call.1} parent=11 // pred_region
          _
        $region16: #{tpu_custom_call.1} parent=11 // pred_fallthru
          _
        // Predicated region
        $region17: #{tpu_custom_call.1} parent=11 // pred_check
          %p184 = pneg %p140
        $region18: #{tpu_custom_call.1} parent=11 // pred_check_branch
          %186 = sbr.rel (%p184) target = $region20
        $region19: #{tpu_custom_call.1} parent=11 // pred_region
          _
        $region20: #{tpu_custom_call.1} parent=11 // pred_fallthru
          _
      $region12: #{tpu_custom_call.1} parent=5 // pred_fallthru
        _
      %p187 = scmp.lt.s32.totalorder %s20, 2
      // Predicated region
      $region21: #{tpu_custom_call.1} parent=5 // pred_check
        %p188 = pneg %p187
      $region22: #{tpu_custom_call.1} parent=5 // pred_check_branch
        %190 = sbr.rel (%p188) target = $region24
      $region23: #{tpu_custom_call.1} parent=5 // pred_region
        // Predicated region
        $region25: #{tpu_custom_call.1} parent=23 // pred_check
          %p191 = pneg %p40
        $region26: #{tpu_custom_call.1} parent=23 // pred_check_branch
          %193 = sbr.rel (%p191) target = $region28
        $region27: #{tpu_custom_call.1} parent=23 // pred_region
          %s194 = sand.u32 %s30, 1
          %s195 = scalar_lea.sflag [#allocation3], %s194
          %s196 = sand.u32 %s30, 1
          %s197 = smul.addr %s196, 8
          %s198 = scalar_lea.vmem [#allocation2], %s197
          %200 = vsyncadd %s195, 0
          %s201 = smul.addr %s20, 2
          %s202 = smul.addr %s201, 4
          %s203 = scalar_lea.hbm %s0, %s202
          %s205 = sshll.u32 %s203, 4
          %s206 = int_to_ptr.hbm [resolvable:$true] %s205
          %s207 = sshll.u32 %s198, 4
          %s208 = int_to_ptr.vmem [resolvable:$true] %s207
          %210 = dma.hbm_to_vmem [thread:$0]  %s206, 128, %s208, %s195
        $region28: #{tpu_custom_call.1} parent=23 // pred_fallthru
          _
        // Predicated region
        $region29: #{tpu_custom_call.1} parent=23 // pred_check
          %p211 = pneg %p66
        $region30: #{tpu_custom_call.1} parent=23 // pred_check_branch
          %213 = sbr.rel (%p211) target = $region32
        $region31: #{tpu_custom_call.1} parent=23 // pred_region
          %s214 = sand.u32 %s20, 1
          %s215 = scalar_lea.sflag [#allocation6], %s214
          %s216 = sand.u32 %s56, 1
          %s217 = smul.addr %s216, 8
          %s218 = scalar_lea.vmem [#allocation5], %s217
          %220 = vsyncadd %s215, 0
          %s221 = smul.addr %s20, 2
          %s222 = smul.addr %s221, 4
          %s223 = scalar_lea.hbm %s1, %s222
          %s225 = sshll.u32 %s223, 4
          %s226 = int_to_ptr.hbm [resolvable:$true] %s225
          %s227 = sshll.u32 %s218, 4
          %s228 = int_to_ptr.vmem [resolvable:$true] %s227
          %230 = dma.hbm_to_vmem [thread:$0]  %s226, 128, %s228, %s215
        $region32: #{tpu_custom_call.1} parent=23 // pred_fallthru
          _
        // Predicated region
        $region33: #{tpu_custom_call.1} parent=23 // pred_check
          %p231 = pneg %p92
        $region34: #{tpu_custom_call.1} parent=23 // pred_check_branch
          %233 = sbr.rel (%p231) target = $region36
        $region35: #{tpu_custom_call.1} parent=23 // pred_region
          %s234 = sand.u32 %s20, 1
          %s235 = scalar_lea.sflag [#allocation6], %s234
          %s236 = sand.u32 %s82, 1
          %s237 = smul.addr %s236, 8
          %s238 = scalar_lea.vmem [#allocation7], %s237
          %240 = vsyncadd %s235, 0
          %s241 = smul.addr %s20, 2
          %s242 = smul.addr %s241, 4
          %s243 = scalar_lea.hbm %s2, %s242
          %s245 = sshll.u32 %s243, 4
          %s246 = int_to_ptr.hbm [resolvable:$true] %s245
          %s247 = sshll.u32 %s238, 4
          %s248 = int_to_ptr.vmem [resolvable:$true] %s247
          %250 = dma.hbm_to_vmem [thread:$0]  %s246, 128, %s248, %s235
        $region36: #{tpu_custom_call.1} parent=23 // pred_fallthru
          _
      $region24: #{tpu_custom_call.1} parent=5 // pred_fallthru
        _
      %p251 = scmp.le.s32.totalorder 1, %s20
      %p252 = scmp.lt.s32.totalorder %s20, 3
      %p253 = pnand %p251, %p252
      %p254 = pneg %p253
      // Predicated region
      $region37: #{tpu_custom_call.1} parent=5 // pred_check
        _
      $region38: #{tpu_custom_call.1} parent=5 // pred_check_branch
        %256 = sbr.rel (%p253) target = $region40
      $region39: #{tpu_custom_call.1} parent=5 // pred_region
        %s257 = ssub.s32 %s20, 1
        %s258 = sand.u32 %s33, 1
        %s259 = scalar_lea.sflag [#allocation3], %s258
        %s260 = sand.u32 %s33, 1
        %s261 = smul.addr %s260, 8
        %s262 = scalar_lea.vmem [#allocation2], %s261
        // Predicated region
        $region41: #{tpu_custom_call.1} parent=39 // pred_check
          %p263 = pneg %p46
        $region42: #{tpu_custom_call.1} parent=39 // pred_check_branch
          %265 = sbr.rel (%p263) target = $region44
        $region43: #{tpu_custom_call.1} parent=39 // pred_region
          %267 = dma.done %s259, 128
        $region44: #{tpu_custom_call.1} parent=39 // pred_fallthru
          _
        %s268 = sand.u32 %s25, 1
        %s269 = scalar_lea.sflag [#allocation6], %s268
        %s270 = sand.u32 %s59, 1
        %s271 = smul.addr %s270, 8
        %s272 = scalar_lea.vmem [#allocation5], %s271
        // Predicated region
        $region45: #{tpu_custom_call.1} parent=39 // pred_check
          %p273 = pneg %p72
        $region46: #{tpu_custom_call.1} parent=39 // pred_check_branch
          %275 = sbr.rel (%p273) target = $region48
        $region47: #{tpu_custom_call.1} parent=39 // pred_region
          %277 = dma.done %s269, 128
        $region48: #{tpu_custom_call.1} parent=39 // pred_fallthru
          _
        %s278 = sand.u32 %s25, 1
        %s279 = scalar_lea.sflag [#allocation6], %s278
        %s280 = sand.u32 %s85, 1
        %s281 = smul.addr %s280, 8
        %s282 = scalar_lea.vmem [#allocation7], %s281
        // Predicated region
        $region49: #{tpu_custom_call.1} parent=39 // pred_check
          %p283 = pneg %p98
        $region50: #{tpu_custom_call.1} parent=39 // pred_check_branch
          %285 = sbr.rel (%p283) target = $region52
        $region51: #{tpu_custom_call.1} parent=39 // pred_region
          %287 = dma.done %s279, 128
        $region52: #{tpu_custom_call.1} parent=39 // pred_fallthru
          _
        %s288 = sand.u32 %s33, 1
        %s289 = scalar_lea.sflag [#allocation3], %s288
        %s290 = sand.u32 %s33, 1
        %s291 = smul.addr %s290, 8
        %s292 = scalar_lea.vmem [#allocation2], %s291
        %p293 = pneg %p46
        %p294 = pneg %p43
        %s295 = sand.u32 %s25, 1
        %s296 = scalar_lea.sflag [#allocation6], %s295
        %s297 = sand.u32 %s59, 1
        %s298 = smul.addr %s297, 8
        %s299 = scalar_lea.vmem [#allocation5], %s298
        %p300 = pneg %p72
        %p301 = pneg %p69
        %s302 = sand.u32 %s25, 1
        %s303 = scalar_lea.sflag [#allocation6], %s302
        %s304 = sand.u32 %s85, 1
        %s305 = smul.addr %s304, 8
        %s306 = scalar_lea.vmem [#allocation7], %s305
        %p307 = pneg %p98
        %p308 = pneg %p95
        %p309 = pneg %p119
        %p310 = pneg %p116
        %p311 = pneg %p140
        %p312 = pneg %p137
        %p313 = pneg %p166
        %p314 = pneg %p163
        %s315 = sand.u32 %s153, 1
        %s316 = scalar_lea.sflag [#allocation4], %s315
        %s317 = sand.u32 %s153, 1
        %s318 = smul.addr %s317, 8
        %s319 = scalar_lea.vmem [#allocation8], %s318
        %v320 = vld [vmem:[%s262] sm:$0xff]
        %322 = vst [vmem:[#allocation1] ss:$2 sm:$0xff] %v320
        %v323 = vld.sshfl [vmem:[#allocation1] sm:$0xff pattern:$0x75316420]
        %v324 = vld.sshfl [vmem:[#allocation1 + $0x8] sm:$0xff pattern:$0x75316420]
        %vm327 = vcmask 1043456
        %v328 = vsel %vm327, %v323, 0.0
        %v329 = vsel %vm327, %v324, 0.0
        %v330 = vadd.f32 %v328, %v329
        %331 = vadd.xlane.f32.xlu0 %v330
        %v332 = vpop.xlane.xlu0 %331
        %v333 = vmul.f32 %v332, 0.00390625
        %v334 = vld [vmem:[%s272] sm:$0xff]
        %336 = vst [vmem:[#allocation1] ss:$2 sm:$0xff] %v334
        %v337 = vld.sshfl [vmem:[#allocation1] sm:$0xff pattern:$0x75316420]
        %v338 = vld.sshfl [vmem:[#allocation1 + $0x8] sm:$0xff pattern:$0x75316420]
        %v341 = vsel %vm327, %v337, 0.0
        %v342 = vsel %vm327, %v338, 0.0
        %v343 = vadd.f32 %v341, %v342
        %344 = vadd.xlane.f32.xlu0 %v343
        %v345 = vpop.xlane.xlu0 %344
        %v346 = vmul.f32 %v345, 0.00390625
        %v347 = vld [vmem:[%s282] sm:$0xff]
        %349 = vst [vmem:[#allocation1] ss:$2 sm:$0xff] %v347
        %v350 = vld.sshfl [vmem:[#allocation1] sm:$0xff pattern:$0x75316420]
        %v351 = vld.sshfl [vmem:[#allocation1 + $0x8] sm:$0xff pattern:$0x75316420]
        %v354 = vsel %vm327, %v350, 0.0
        %v355 = vsel %vm327, %v351, 0.0
        %v356 = vadd.f32 %v354, %v355
        %357 = vadd.xlane.f32.xlu0 %v356
        %v358 = vpop.xlane.xlu0 %357
        %v359 = vmul.f32 %v358, 0.00390625
        %v360 = vxor.u32 %v333, 2147483648
        %v361 = vmul.f32 %v360, 1.442695
        %v362 = vpow.pop %v361
        %v363 = vadd.f32 %v362, 1.0
        %v364 = vrcp.pop %v363
        %v365 = vmul.f32 %v363, %v364
        %v366 = vsub.f32 1.0, %v365
        %v367 = vmul.f32 %v364, %v366
        %v368 = vadd.f32 %v364, %v367
        %vm369 = vweird.f32 %v363
        %vm370 = vweird.f32 %v364
        %vm371 = vmor %vm369, %vm370
        %v372 = vsel %vm371, %v364, %v368
        %v373 = vand.u32 2147483647, %v363
        %vm374 = vcmp.eq.f32.partialorder %v373, 8.507059e+37
        %v375 = vand.u32 %v363, 2147483648
        %v376 = vor.u32 1.1754944e-38, %v375
        %v377 = vsel %vm374, %v376, %v372
        %v378 = vmul.f32 1.0, %v377
        %v379 = vmul.f32 %v378, 1.442695
        %v380 = vpow.pop %v379
        %v381 = vxor.u32 %v346, 2147483648
        %v382 = vmul.f32 %v381, 1.442695
        %v383 = vpow.pop %v382
        %v384 = vadd.f32 %v383, 1.0
        %v385 = vrcp.pop %v384
        %v386 = vmul.f32 %v384, %v385
        %v387 = vsub.f32 1.0, %v386
        %v388 = vmul.f32 %v385, %v387
        %v389 = vadd.f32 %v385, %v388
        %vm390 = vweird.f32 %v384
        %vm391 = vweird.f32 %v385
        %vm392 = vmor %vm390, %vm391
        %v393 = vsel %vm392, %v385, %v389
        %v394 = vand.u32 2147483647, %v384
        %vm395 = vcmp.eq.f32.partialorder %v394, 8.507059e+37
        %v396 = vand.u32 %v384, 2147483648
        %v397 = vor.u32 1.1754944e-38, %v396
        %v398 = vsel %vm395, %v397, %v393
        %v399 = vmul.f32 1.0, %v398
        %v400 = vmul.f32 %v399, 1.442695
        %v401 = vpow.pop %v400
        %v402 = vxor.u32 %v359, 2147483648
        %v403 = vmul.f32 %v402, 1.442695
        %v404 = vpow.pop %v403
        %v405 = vadd.f32 %v404, 1.0
        %v406 = vrcp.pop %v405
        %v407 = vmul.f32 %v405, %v406
        %v408 = vsub.f32 1.0, %v407
        %v409 = vmul.f32 %v406, %v408
        %v410 = vadd.f32 %v406, %v409
        %vm411 = vweird.f32 %v405
        %vm412 = vweird.f32 %v406
        %vm413 = vmor %vm411, %vm412
        %v414 = vsel %vm413, %v406, %v410
        %v415 = vand.u32 2147483647, %v405
        %vm416 = vcmp.eq.f32.partialorder %v415, 8.507059e+37
        %v417 = vand.u32 %v405, 2147483648
        %v418 = vor.u32 1.1754944e-38, %v417
        %v419 = vsel %vm416, %v418, %v414
        %v420 = vmul.f32 1.0, %v419
        %v421 = vmul.f32 %v420, 1.442695
        %v422 = vpow.pop %v421
        %v423 = vadd.f32 %v380, %v401
        %v424 = vadd.f32 %v423, %v422
        %v425 = vrcp.pop %v424
        %v426 = vmul.f32 %v424, %v425
        %v427 = vsub.f32 1.0, %v426
        %v428 = vmul.f32 %v425, %v427
        %v429 = vadd.f32 %v425, %v428
        %vm430 = vweird.f32 %v424
        %vm431 = vweird.f32 %v425
        %vm432 = vmor %vm430, %vm431
        %v433 = vsel %vm432, %v425, %v429
        %v434 = vand.u32 2147483647, %v424
        %vm435 = vcmp.eq.f32.partialorder %v434, 8.507059e+37
        %v436 = vand.u32 %v424, 2147483648
        %v437 = vor.u32 1.1754944e-38, %v436
        %v438 = vsel %vm435, %v437, %v433
        %v439 = vmul.f32 %v380, %v438
        %v440 = vmul.f32 %v401, %v438
        %v441 = vmul.f32 %v422, %v438
        %442 = vst [vmem:[#allocation1] ss:$2 sm:$0xff] %v320
        %v443 = vld.sshfl [vmem:[#allocation1] sm:$0xff pattern:$0x75316420]
        %v444 = vld.sshfl [vmem:[#allocation1 + $0x8] sm:$0xff pattern:$0x75316420]
        %v447 = vmul.f32 %v439, %v443
        %v448 = vmul.f32 %v439, %v444
        %449 = vst [vmem:[#allocation1] ss:$2 sm:$0xff] %v334
        %v450 = vld.sshfl [vmem:[#allocation1] sm:$0xff pattern:$0x75316420]
        %v451 = vld.sshfl [vmem:[#allocation1 + $0x8] sm:$0xff pattern:$0x75316420]
        %v454 = vmul.f32 %v440, %v450
        %v455 = vmul.f32 %v440, %v451
        %v456 = vadd.f32 %v447, %v454
        %v457 = vadd.f32 %v448, %v455
        %458 = vst [vmem:[#allocation1] ss:$2 sm:$0xff] %v347
        %v459 = vld.sshfl [vmem:[#allocation1] sm:$0xff pattern:$0x75316420]
        %v460 = vld.sshfl [vmem:[#allocation1 + $0x8] sm:$0xff pattern:$0x75316420]
        %v463 = vmul.f32 %v441, %v459
        %v464 = vmul.f32 %v441, %v460
        %v465 = vadd.f32 %v456, %v463
        %v466 = vadd.f32 %v457, %v464
        %v467 = vld [vmem:[%s3] sm:$0xf]
        %v468 = vld [vmem:[%s4] sm:$0xf]
        %470 = vset.pattern.permute.xlu0 0
        %471 = vperm.xlu0 %470, %v468
        %v472 = vpop.permute.xlu0 %471
        %vm474 = vcmask 31744
        %v476 = vsel %vm474, %v467, 0
        %v479 = vsel %vm327, %v465, 0
        %v482 = vsel %vm327, %v466, 0
        %484 = vmatpush.msra.mxu0 0.0
        %485 = vmatpush.msra.mxu0 0.0
        %486 = vmatpush.msra.mxu0 0.0
        %487 = vmatpush.msra.mxu0 0.0
        %488 = vmatpush.msra.mxu0 0.0
        %489 = vmatpush.msra.mxu0 0.0
        %490 = vmatpush.msra.mxu0 0.0
        %491 = vmatpush.msra.mxu0 0.0
        %492 = vmatpush.msra.mxu0 0.0
        %493 = vmatpush.msra.mxu0 0.0
        %494 = vmatpush.msra.mxu0 0.0
        %495 = vmatpush.msra.mxu0 0.0
        %496 = vmatpush.msra.mxu0 0.0
        %497 = vmatpush.msra.mxu0 0.0
        %498 = vmatpush.msra.mxu0 0.0
        %499 = vmatpush.msra.mxu0 %v479
        %500 = vmatmul.f32.gmra.mxu0 %v476
        %v501 = vpop.f32.mrf.mxu0
        %v502 = vadd.f32 %v472, %v501
        %503 = vdwg.mxu0
        %504 = vmatpush.msra.mxu0 0.0
        %505 = vmatpush.msra.mxu0 0.0
        %506 = vmatpush.msra.mxu0 0.0
        %507 = vmatpush.msra.mxu0 0.0
        %508 = vmatpush.msra.mxu0 0.0
        %509 = vmatpush.msra.mxu0 0.0
        %510 = vmatpush.msra.mxu0 0.0
        %511 = vmatpush.msra.mxu0 0.0
        %512 = vmatpush.msra.mxu0 0.0
        %513 = vmatpush.msra.mxu0 0.0
        %514 = vmatpush.msra.mxu0 0.0
        %515 = vmatpush.msra.mxu0 0.0
        %516 = vmatpush.msra.mxu0 0.0
        %517 = vmatpush.msra.mxu0 0.0
        %518 = vmatpush.msra.mxu0 0.0
        %519 = vmatpush.msra.mxu0 %v482
        %520 = vmatmul.f32.gmra.mxu0 %v476
        %v521 = vpop.f32.mrf.mxu0
        %v522 = vadd.f32 %v472, %v521
        %523 = vdwg.mxu0
        %v524 = vmax.f32 %v502, 0.0
        %v525 = vmax.f32 %v522, 0.0
        %v528 = vrot.slane %v525, 4
        %v529 = vsel %vm327, %v524, %v528
        %531 = vst [vmem:[%s319] sm:$0xff] %v529
        %s532 = sand.u32 %s153, 1
        %s533 = scalar_lea.sflag [#allocation4], %s532
        %s534 = sand.u32 %s153, 1
        %s535 = smul.addr %s534, 8
        %s536 = scalar_lea.vmem [#allocation8], %s535
        // Predicated region
        $region53: #{tpu_custom_call.1} parent=39 // pred_check
          %p537 = pneg %p163
        $region54: #{tpu_custom_call.1} parent=39 // pred_check_branch
          %539 = sbr.rel (%p537) target = $region56
        $region55: #{tpu_custom_call.1} parent=39 // pred_region
          %541 = vsyncadd %s533, 0
          %s542 = smul.addr %s25, 2
          %s543 = smul.addr %s542, 4
          %s544 = scalar_lea.hbm %s5, %s543
          %s546 = sshll.u32 %s536, 4
          %s547 = int_to_ptr.vmem [resolvable:$true] %s546
          %s548 = sshll.u32 %s544, 4
          %s549 = int_to_ptr.hbm [resolvable:$true] %s548
          %551 = dma.vmem_to_hbm [thread:$0]  %s547, 128, %s549, %s533
        $region56: #{tpu_custom_call.1} parent=39 // pred_fallthru
          _
      $region40: #{tpu_custom_call.1} parent=5 // pred_fallthru
        _
      %p552 = scmp.le.s32.totalorder 2, %s20
      // Predicated region
      $region57: #{tpu_custom_call.1} parent=5 // pred_check
        %p553 = pneg %p552
      $region58: #{tpu_custom_call.1} parent=5 // pred_check_branch
        %555 = sbr.rel (%p553) target = $region60
      $region59: #{tpu_custom_call.1} parent=5 // pred_region
        %s556 = ssub.s32 %s20, 2
        // Predicated region
        $region61: #{tpu_custom_call.1} parent=59 // pred_check
          %p557 = pneg %p169
        $region62: #{tpu_custom_call.1} parent=59 // pred_check_branch
          %559 = sbr.rel (%p557) target = $region64
        $region63: #{tpu_custom_call.1} parent=59 // pred_region
          %s560 = sand.u32 %s154, 1
          %s561 = scalar_lea.sflag [#allocation4], %s560
          %s562 = sand.u32 %s154, 1
          %s563 = smul.addr %s562, 8
          %s564 = scalar_lea.vmem [#allocation8], %s563
          %566 = dma.done %s561, 128
        $region64: #{tpu_custom_call.1} parent=59 // pred_fallthru
          _
      $region60: #{tpu_custom_call.1} parent=5 // pred_fallthru
        _
    $region6: #{tpu_custom_call.1} parent=1 // loop_footer
      %s24 = sadd.s32 1, %s20
    $region7: #{tpu_custom_call.1} parent=1 // loop_footer_branch
      %19 = sbr.rel target = $region3
    $region8: #{tpu_custom_call.1} parent=1 // loop_exit
      _
    %567 = vsyncpa [#allocation3], 1
    %s568 = scalar_lea.sflag [#allocation3], 1
    %569 = vsyncpa %s568, 1
    %570 = vsyncpa [#allocation6], 1
    %s571 = scalar_lea.sflag [#allocation6], 1
    %572 = vsyncpa %s571, 1
    %573 = vsyncpa [#allocation4], 1
    %s574 = scalar_lea.sflag [#allocation4], 1
    %575 = vsyncpa %s574, 1

</llo_original>
